<compile_context>
chip_gen: v5e
topology: v5e:2x2
jax: 0.10.0
libtpu: 0.0.40
codegen_flags: <defaults>
</compile_context>

<pallas_src>
import functools
import math

import jax
import jax.numpy as jnp
from jax.experimental import pallas as pl
from jax.experimental.pallas import tpu as pltpu


def _segment_embed_kernel(x_ref, w_ref, b_ref, o_ref, *, precision):
    # x_ref: (tile_m, K), w_ref: (K, N), b_ref: (1, N), o_ref: (tile_m, N)
    acc = jnp.dot(x_ref[...], w_ref[...],
                  preferred_element_type=jnp.float32,
                  precision=precision)
    o_ref[...] = (acc + b_ref[...]).astype(o_ref.dtype)


def _device_kind():
    try:
        return jax.devices()[0].device_kind.lower()
    except Exception:
        return ""


def _vmem_budget_bytes():
    """Generation-aware per-kernel VMEM budget for the pipelined tiles."""
    cap = None
    try:
        cap = pltpu.get_tpu_info().vmem_capacity_bytes
    except Exception:
        cap = None
    if not cap:
        kind = _device_kind()
        cap = (64 << 20) if "v7" in kind else (128 << 20)
    # Stay well clear of physical VMEM (v7x: 64 MiB per TC): <= ~28 MiB total.
    return min(cap // 2, 28 << 20)


def _choose_pack(segment_len, embedding_dim, *, max_k):
    """Packing factor S: smallest S making the output (S*emb) lane-dense and,
    if it fits within max_k, also the input (S*seg) lane-dense.  Output-store
    density is the priority (the output stream dominates HBM traffic)."""
    s_out = 128 // math.gcd(embedding_dim, 128)    # minimal lane-dense N
    s_in = 128 // math.gcd(segment_len, 128)       # minimal lane-dense K
    s_both = s_out * s_in // math.gcd(s_out, s_in)
    if s_both * segment_len <= max_k:
        return s_both
    # Back off: largest multiple of s_out with K <= max_k; never below s_out.
    s_cap = max_k // segment_len
    if s_cap >= s_out:
        return (s_cap // s_out) * s_out
    return s_out


def _choose_tile_m(m_rows, k, n, itemsize, budget):
    resident = 2 * itemsize * (k * n + n)          # double-buffered weight + bias
    per_row = 2 * itemsize * (k + n)               # double-buffered in + out row
    cap_rows = max(8, int((budget - resident) // max(per_row, 1)))
    depth_cap = max(8, m_rows // 8)                # keep >= ~8 grid steps
    tile_m = min(2048, cap_rows, depth_cap, m_rows)
    if tile_m < m_rows:
        tile_m = max(8, (tile_m // 8) * 8)         # (8,128)-legal partial blocks
    else:
        tile_m = m_rows                            # full extent is always legal
    return tile_m


def segment_embedding(x, weight, bias, segment_len, *, out_dtype=None,
                      precision=jax.lax.Precision.HIGHEST):
    """x: (batch, num_vars, input_len); weight: (embedding_dim, segment_len);
    bias: (embedding_dim,). Returns (batch, num_vars, num_segments, emb_dim)."""
    batch, num_vars, input_len = x.shape
    assert input_len % segment_len == 0
    num_segments = input_len // segment_len
    embedding_dim = weight.shape[0]
    out_dtype = jnp.dtype(x.dtype if out_dtype is None else out_dtype)
    m = batch * num_vars * num_segments
    itemsize = x.dtype.itemsize

    # ---- packing factor: lane-dense I/O without inflating MXU work ----
    kind = _device_kind()
    exact_f32 = (x.dtype == jnp.float32 and precision == jax.lax.Precision.HIGHEST)
    # HIGHEST-precision f32 runs v5e's MXU ~3x slower: keep K <= 64 there.
    max_k = 64 if (exact_f32 and ("v5 lite" in kind or "v5e" in kind)) else 128
    s_pack = _choose_pack(segment_len, embedding_dim, max_k=max_k)
    k = s_pack * segment_len
    n = s_pack * embedding_dim

    # ---- pack rows; pad by < s_pack segments only if m isn't divisible ----
    m_rows = pl.cdiv(m, s_pack)
    pad_segs = m_rows * s_pack - m
    x_flat = x.reshape(m, segment_len)
    if pad_segs:
        x_flat = jnp.pad(x_flat, ((0, pad_segs), (0, 0)))   # input = minor stream
    x2d = x_flat.reshape(m_rows, k)                          # row-major: free

    # TODO(synk): optionally cast x2d/weights to bf16 here on v6e/v7x when
    # exact-f32 input parity is not required (halves the input stream too).

    # Block-diagonal weight: exact zeros off-diagonal (no cross-segment leak).
    w_t = weight.T.astype(x.dtype)                                  # (seg, emb)
    eye = jnp.eye(s_pack, dtype=w_t.dtype)
    w_pk = (eye[:, :, None, None] * w_t[None, None, :, :])          # (S,S,seg,emb)
    w_pk = w_pk.transpose(0, 2, 1, 3).reshape(k, n)                 # (S*seg, S*emb)
    b_pk = jnp.tile(bias.astype(x.dtype), s_pack).reshape(1, n)

    # ---- row tiling & explicit VMEM accounting ----
    budget = _vmem_budget_bytes()
    tile_m = _choose_tile_m(m_rows, k, n, itemsize, budget)
    grid_m = pl.cdiv(m_rows, tile_m)

    vmem_usage = (2 * tile_m * (k + n) * itemsize       # in/out tiles (double-buf)
                  + 2 * (k * n + n) * itemsize)         # resident weight + bias
    vmem_limit = int(min(max(32 << 20, (vmem_usage * 3) // 2 + (2 << 20)),
                         48 << 20))

    cost = pl.CostEstimate(
        flops=2 * m * segment_len * embedding_dim,
        transcendentals=0,
        bytes_accessed=int(itemsize * m * segment_len
                           + out_dtype.itemsize * m * embedding_dim
                           + w_pk.size * itemsize + b_pk.size * itemsize),
    )

    out2d = pl.pallas_call(
        functools.partial(_segment_embed_kernel, precision=precision),
        out_shape=jax.ShapeDtypeStruct((m_rows, n), out_dtype),
        grid_spec=pltpu.PrefetchScalarGridSpec(
            num_scalar_prefetch=0,
            grid=(grid_m,),
            in_specs=[
                pl.BlockSpec((tile_m, k), lambda i: (i, 0)),
                pl.BlockSpec((k, n), lambda i: (0, 0)),   # weight: VMEM-resident
                pl.BlockSpec((1, n), lambda i: (0, 0)),   # bias: VMEM-resident
            ],
            out_specs=pl.BlockSpec((tile_m, n), lambda i: (i, 0)),
        ),
        compiler_params=pltpu.CompilerParams(
            dimension_semantics=("parallel",),
            vmem_limit_bytes=vmem_limit),
        cost_estimate=cost,
    )(x2d, w_pk, b_pk)

    # (m_rows, S*emb) row-major == (m_rows*S, emb) row-major -> free reshape.
    out_flat = out2d.reshape(m_rows * s_pack, embedding_dim)
    if pad_segs:
        out_flat = out_flat[:m]
    return out_flat.reshape(batch, num_vars, num_segments, embedding_dim)


if __name__ == "__main__":
    # Small deterministic example consistent with the module's forward.
    batch, num_vars, input_len = 2, 4, 16
    segment_len, embedding_dim = 8, 32

    key = jax.random.PRNGKey(0)
    kx, kw, kb = jax.random.split(key, 3)

    x = jax.random.normal(kx, (batch, num_vars, input_len), dtype=jnp.float32)

    # nn.Linear(segment_len, embedding_dim) default init:
    # U(-1/sqrt(in_features), 1/sqrt(in_features)) for weight and bias.
    bound = 1.0 / math.sqrt(segment_len)
    weight = jax.random.uniform(kw, (embedding_dim, segment_len),
                                minval=-bound, maxval=bound, dtype=jnp.float32)
    bias = jax.random.uniform(kb, (embedding_dim,),
                              minval=-bound, maxval=bound, dtype=jnp.float32)

    out = segment_embedding(x, weight, bias, segment_len)
    out = jax.block_until_ready(out)

    # Pure-JAX reference of the PyTorch forward (same HIGHEST matmul precision).
    num_segments = input_len // segment_len
    ref = (jnp.dot(x.reshape(batch * num_vars * num_segments, segment_len),
                   weight.T, precision=jax.lax.Precision.HIGHEST)
           + bias).reshape(batch, num_vars, num_segments, embedding_dim)

    assert out.shape == (batch, num_vars, num_segments, embedding_dim)
    assert jnp.allclose(out, ref, atol=1e-5, rtol=1e-5)

    print("KERNEL_OK")
</pallas_src>

<mosaic_0001>
module attributes {stable_mosaic.version = 11 : i64} {
  func.func @_segment_embed_kernel(%arg0: i32, %arg1: memref<1x128xf32, #tpu.memory_space<vmem>>, %arg2: memref<128x512xf32, #tpu.memory_space<vmem>>, %arg3: memref<1x512xf32, #tpu.memory_space<vmem>>, %arg4: memref<1x512xf32, #tpu.memory_space<vmem>>) attributes {dimension_semantics = [#tpu.dimension_semantics<parallel>], iteration_bounds = array<i64: 1>, scalar_prefetch = 0 : i64, scratch_operands = 0 : i64, tpu.core_type = #tpu.core_type<tc>, window_params = [{transform_indices = @transform_0, window_bounds = array<i64: 1, 128>}, {pipeline_mode = #tpu.pipeline_mode<synchronous>, transform_indices = @transform_1, window_bounds = array<i64: 128, 512>}, {pipeline_mode = #tpu.pipeline_mode<synchronous>, transform_indices = @transform_2, window_bounds = array<i64: 1, 512>}, {transform_indices = @transform_3, window_bounds = array<i64: 1, 512>}]} {
    %c0 = arith.constant 0 : index
    %c0_0 = arith.constant 0 : index
    %0 = vector.load %arg1[%c0, %c0_0] : memref<1x128xf32, #tpu.memory_space<vmem>>, vector<1x128xf32>
    %c0_1 = arith.constant 0 : index
    %c0_2 = arith.constant 0 : index
    %1 = vector.load %arg2[%c0_1, %c0_2] : memref<128x512xf32, #tpu.memory_space<vmem>>, vector<128x512xf32>
    %cst = arith.constant dense<0.000000e+00> : vector<1x512xf32>
    %2 = tpu.matmul %0, %1, %cst {dimension_numbers = #tpu.dot_dimension_numbers<[1], [0], [0], [1], [0, 0, 1, 1], [], []>, precision = #tpu.contract_precision<fp32>} : vector<1x128xf32>, vector<128x512xf32>, vector<1x512xf32> -> vector<1x512xf32>
    %c0_3 = arith.constant 0 : index
    %c0_4 = arith.constant 0 : index
    %3 = vector.load %arg3[%c0_3, %c0_4] : memref<1x512xf32, #tpu.memory_space<vmem>>, vector<1x512xf32>
    %4 = arith.addf %2, %3 : vector<1x512xf32>
    %c0_5 = arith.constant 0 : index
    %c0_6 = arith.constant 0 : index
    %5 = vector.load %arg4[%c0_5, %c0_6] : memref<1x512xf32, #tpu.memory_space<vmem>>, vector<1x512xf32>
    tpu.vector_store %arg4[%c0_5, %c0_6], %4 {strides = array<i32>} : memref<1x512xf32, #tpu.memory_space<vmem>>, vector<1x512xf32>,
    return
  }
  func.func @transform_0(%arg0: i32) -> (i32, i32) {
    %c0_i32 = arith.constant 0 : i32
    %c0_i32_0 = arith.constant 0 : i32
    return %arg0, %c0_i32 : i32, i32
  }
  func.func @transform_1(%arg0: i32) -> (i32, i32) {
    %c0_i32 = arith.constant 0 : i32
    %c0_i32_0 = arith.constant 0 : i32
    %c0_i32_1 = arith.constant 0 : i32
    return %c0_i32, %c0_i32_0 : i32, i32
  }
  func.func @transform_2(%arg0: i32) -> (i32, i32) {
    %c0_i32 = arith.constant 0 : i32
    %c0_i32_0 = arith.constant 0 : i32
    %c0_i32_1 = arith.constant 0 : i32
    return %c0_i32, %c0_i32_0 : i32, i32
  }
  func.func @transform_3(%arg0: i32) -> (i32, i32) {
    %c0_i32 = arith.constant 0 : i32
    %c0_i32_0 = arith.constant 0 : i32
    return %arg0, %c0_i32 : i32, i32
  }
}

</mosaic_0001>

<llo_original>
// kernel: tpu_custom_call.1
$region0: #{tpu_custom_call.1}
  #allocation0 [shape = 'u32[]', space=smem, size = 0x4, offset = 0x4, fixed_abs, tag = 'smem constant byte address 0x4 - core index']
  #allocation1 [shape = 'u32[72,128]{1,0:T(1,128)}', space=vmem, size = 0x9000, scoped, tag = 'internal scratch']
  %s0 = inlined_call_operand.hbm [shape: f32[1,128], index: 0, kind: input, shape index: {}]
  %s1 = inlined_call_operand.hbm [shape: f32[128,512], index: 1, kind: input, shape index: {}]
  %s2 = inlined_call_operand.hbm [shape: f32[1,512], index: 2, kind: input, shape index: {}]
  %s3 = inlined_call_operand.hbm [shape: f32[1,512], index: 3, kind: output, shape index: {}]
  %s4 = sld [smem:[#allocation0]]
  $region34: #{tpu_custom_call.1} parent=0
    _
  %s6 = ssub.s32 1, %s4
  %s7 = scalar_select 0, %s6, %s4
  $region1: #{tpu_custom_call.1} parent=0
    #allocation2 [shape = 'u8[512]{0}', space=vmem, size = 0x400, scoped, tag = 'input window, operand 0, single buffered']
    #allocation3 [shape = 's32[1]{0}', space=sflag, size = 0x4, scoped, tag = 'scoped memory for tpu_custom_call.1']
    #allocation4 [shape = 's32[1]{0}', space=sflag, size = 0x4, scoped, tag = 'scoped memory for tpu_custom_call.1']
    #allocation5 [shape = 'u8[262144]{0}', space=vmem, size = 0x40000, scoped, tag = 'input window, operand 1, single buffered']
    #allocation6 [shape = 's32[1]{0}', space=sflag, size = 0x4, scoped, tag = 'scoped memory for tpu_custom_call.1']
    #allocation7 [shape = 'u8[2048]{0}', space=vmem, size = 0x800, scoped, tag = 'input window, operand 2, single buffered']
    #allocation8 [shape = 'u8[2048]{0}', space=vmem, size = 0x800, scoped, tag = 'output window, operand 0, single buffered']
    %8 = vsyncpa [#allocation3], 0
    %9 = vsyncpa [#allocation6], 0
    %10 = vsyncpa [#allocation4], 0
    // Predicated region
    $region2: #{tpu_custom_call.1} parent=1 // pred_check
      _
    $region3: #{tpu_custom_call.1} parent=1 // pred_check_branch
      %12 = sbr.rel (0) target = $region5
    $region4: #{tpu_custom_call.1} parent=1 // pred_region
      %14 = vsyncadd [#allocation3], 0
      %s16 = sshll.u32 %s0, 4
      %s17 = int_to_ptr.hbm [resolvable:$true] %s16
      %s18 = sshll.u32 [#allocation2], 4
      %s19 = int_to_ptr.vmem [resolvable:$true] %s18
      %21 = dma.hbm_to_vmem [thread:$0]  %s17, 16, %s19, [#allocation3]
    $region5: #{tpu_custom_call.1} parent=1 // pred_fallthru
      _
    // Predicated region
    $region6: #{tpu_custom_call.1} parent=1 // pred_check
      _
    $region7: #{tpu_custom_call.1} parent=1 // pred_check_branch
      %23 = sbr.rel (0) target = $region9
    $region8: #{tpu_custom_call.1} parent=1 // pred_region
      %25 = vsyncadd [#allocation6], 0
      %s26 = sshll.u32 %s1, 4
      %s27 = int_to_ptr.hbm [resolvable:$true] %s26
      %s28 = sshll.u32 [#allocation5], 4
      %s29 = int_to_ptr.vmem [resolvable:$true] %s28
      %34 = dma.hbm_to_vmem [thread:$0]  %s27, 8192, %s29, [#allocation6], 512, 512, 32
    $region9: #{tpu_custom_call.1} parent=1 // pred_fallthru
      _
    // Predicated region
    $region10: #{tpu_custom_call.1} parent=1 // pred_check
      _
    $region11: #{tpu_custom_call.1} parent=1 // pred_check_branch
      %36 = sbr.rel (0) target = $region13
    $region12: #{tpu_custom_call.1} parent=1 // pred_region
      %38 = vsyncadd [#allocation6], 0
      %s40 = sshll.u32 %s2, 4
      %s41 = int_to_ptr.hbm [resolvable:$true] %s40
      %s42 = sshll.u32 [#allocation7], 4
      %s43 = int_to_ptr.vmem [resolvable:$true] %s42
      %45 = dma.hbm_to_vmem [thread:$0]  %s41, 64, %s43, [#allocation6]
    $region13: #{tpu_custom_call.1} parent=1 // pred_fallthru
      _
    // Predicated region
    $region14: #{tpu_custom_call.1} parent=1 // pred_check
      _
    $region15: #{tpu_custom_call.1} parent=1 // pred_check_branch
      %47 = sbr.rel (0) target = $region17
    $region16: #{tpu_custom_call.1} parent=1 // pred_region
      %49 = dma.done [#allocation3], 16
    $region17: #{tpu_custom_call.1} parent=1 // pred_fallthru
      _
    // Predicated region
    $region18: #{tpu_custom_call.1} parent=1 // pred_check
      _
    $region19: #{tpu_custom_call.1} parent=1 // pred_check_branch
      %51 = sbr.rel (0) target = $region21
    $region20: #{tpu_custom_call.1} parent=1 // pred_region
      %53 = dma.done [#allocation6], 8192
    $region21: #{tpu_custom_call.1} parent=1 // pred_fallthru
      _
    // Predicated region
    $region22: #{tpu_custom_call.1} parent=1 // pred_check
      _
    $region23: #{tpu_custom_call.1} parent=1 // pred_check_branch
      %55 = sbr.rel (0) target = $region25
    $region24: #{tpu_custom_call.1} parent=1 // pred_region
      %57 = dma.done [#allocation6], 64
    $region25: #{tpu_custom_call.1} parent=1 // pred_fallthru
      _
    %v58 = vld [vmem:[#allocation2] sm:$0x1]
    %v59 = vld [vmem:[#allocation5] sm:$0xff]
    %v60 = vld [vmem:[#allocation5 + $0x8] sm:$0xff]
    %v61 = vld [vmem:[#allocation5 + $0x10] sm:$0xff]
    %v62 = vld [vmem:[#allocation5 + $0x18] sm:$0xff]
    %v63 = vld [vmem:[#allocation5 + $0x20] sm:$0xff]
    %v64 = vld [vmem:[#allocation5 + $0x28] sm:$0xff]
    %v65 = vld [vmem:[#allocation5 + $0x30] sm:$0xff]
    %v66 = vld [vmem:[#allocation5 + $0x38] sm:$0xff]
    %v67 = vld [vmem:[#allocation5 + $0x40] sm:$0xff]
    %v68 = vld [vmem:[#allocation5 + $0x48] sm:$0xff]
    %v69 = vld [vmem:[#allocation5 + $0x50] sm:$0xff]
    %v70 = vld [vmem:[#allocation5 + $0x58] sm:$0xff]
    %v71 = vld [vmem:[#allocation5 + $0x60] sm:$0xff]
    %v72 = vld [vmem:[#allocation5 + $0x68] sm:$0xff]
    %v73 = vld [vmem:[#allocation5 + $0x70] sm:$0xff]
    %v74 = vld [vmem:[#allocation5 + $0x78] sm:$0xff]
    %v75 = vld [vmem:[#allocation5 + $0x80] sm:$0xff]
    %v76 = vld [vmem:[#allocation5 + $0x88] sm:$0xff]
    %v77 = vld [vmem:[#allocation5 + $0x90] sm:$0xff]
    %v78 = vld [vmem:[#allocation5 + $0x98] sm:$0xff]
    %v79 = vld [vmem:[#allocation5 + $0xa0] sm:$0xff]
    %v80 = vld [vmem:[#allocation5 + $0xa8] sm:$0xff]
    %v81 = vld [vmem:[#allocation5 + $0xb0] sm:$0xff]
    %v82 = vld [vmem:[#allocation5 + $0xb8] sm:$0xff]
    %v83 = vld [vmem:[#allocation5 + $0xc0] sm:$0xff]
    %v84 = vld [vmem:[#allocation5 + $0xc8] sm:$0xff]
    %v85 = vld [vmem:[#allocation5 + $0xd0] sm:$0xff]
    %v86 = vld [vmem:[#allocation5 + $0xd8] sm:$0xff]
    %v87 = vld [vmem:[#allocation5 + $0xe0] sm:$0xff]
    %v88 = vld [vmem:[#allocation5 + $0xe8] sm:$0xff]
    %v89 = vld [vmem:[#allocation5 + $0xf0] sm:$0xff]
    %v90 = vld [vmem:[#allocation5 + $0xf8] sm:$0xff]
    %v91 = vld [vmem:[#allocation5 + $0x100] sm:$0xff]
    %v92 = vld [vmem:[#allocation5 + $0x108] sm:$0xff]
    %v93 = vld [vmem:[#allocation5 + $0x110] sm:$0xff]
    %v94 = vld [vmem:[#allocation5 + $0x118] sm:$0xff]
    %v95 = vld [vmem:[#allocation5 + $0x120] sm:$0xff]
    %v96 = vld [vmem:[#allocation5 + $0x128] sm:$0xff]
    %v97 = vld [vmem:[#allocation5 + $0x130] sm:$0xff]
    %v98 = vld [vmem:[#allocation5 + $0x138] sm:$0xff]
    %v99 = vld [vmem:[#allocation5 + $0x140] sm:$0xff]
    %v100 = vld [vmem:[#allocation5 + $0x148] sm:$0xff]
    %v101 = vld [vmem:[#allocation5 + $0x150] sm:$0xff]
    %v102 = vld [vmem:[#allocation5 + $0x158] sm:$0xff]
    %v103 = vld [vmem:[#allocation5 + $0x160] sm:$0xff]
    %v104 = vld [vmem:[#allocation5 + $0x168] sm:$0xff]
    %v105 = vld [vmem:[#allocation5 + $0x170] sm:$0xff]
    %v106 = vld [vmem:[#allocation5 + $0x178] sm:$0xff]
    %v107 = vld [vmem:[#allocation5 + $0x180] sm:$0xff]
    %v108 = vld [vmem:[#allocation5 + $0x188] sm:$0xff]
    %v109 = vld [vmem:[#allocation5 + $0x190] sm:$0xff]
    %v110 = vld [vmem:[#allocation5 + $0x198] sm:$0xff]
    %v111 = vld [vmem:[#allocation5 + $0x1a0] sm:$0xff]
    %v112 = vld [vmem:[#allocation5 + $0x1a8] sm:$0xff]
    %v113 = vld [vmem:[#allocation5 + $0x1b0] sm:$0xff]
    %v114 = vld [vmem:[#allocation5 + $0x1b8] sm:$0xff]
    %v115 = vld [vmem:[#allocation5 + $0x1c0] sm:$0xff]
    %v116 = vld [vmem:[#allocation5 + $0x1c8] sm:$0xff]
    %v117 = vld [vmem:[#allocation5 + $0x1d0] sm:$0xff]
    %v118 = vld [vmem:[#allocation5 + $0x1d8] sm:$0xff]
    %v119 = vld [vmem:[#allocation5 + $0x1e0] sm:$0xff]
    %v120 = vld [vmem:[#allocation5 + $0x1e8] sm:$0xff]
    %v121 = vld [vmem:[#allocation5 + $0x1f0] sm:$0xff]
    %v122 = vld [vmem:[#allocation5 + $0x1f8] sm:$0xff]
    %v123 = vld [vmem:[#allocation7] sm:$0xf]
    %v125 = vperm.slane %v123, 0
    %v126 = vperm.slane %v123, 1
    %v127 = vperm.slane %v123, 2
    %v128 = vperm.slane %v123, 3
    %v133 = vand.u32 %v119, 4294901760
    %134 = vmatpush.msra.mxu0 %v133
    %v135 = vand.u32 %v115, 4294901760
    %136 = vmatpush.msra.mxu0 %v135
    %v137 = vand.u32 %v111, 4294901760
    %138 = vmatpush.msra.mxu0 %v137
    %v139 = vand.u32 %v107, 4294901760
    %140 = vmatpush.msra.mxu0 %v139
    %v141 = vand.u32 %v103, 4294901760
    %142 = vmatpush.msra.mxu0 %v141
    %v143 = vand.u32 %v99, 4294901760
    %144 = vmatpush.msra.mxu0 %v143
    %v145 = vand.u32 %v95, 4294901760
    %146 = vmatpush.msra.mxu0 %v145
    %v147 = vand.u32 %v91, 4294901760
    %148 = vmatpush.msra.mxu0 %v147
    %v149 = vand.u32 %v87, 4294901760
    %150 = vmatpush.msra.mxu0 %v149
    %v151 = vand.u32 %v83, 4294901760
    %152 = vmatpush.msra.mxu0 %v151
    %v153 = vand.u32 %v79, 4294901760
    %154 = vmatpush.msra.mxu0 %v153
    %v155 = vand.u32 %v75, 4294901760
    %156 = vmatpush.msra.mxu0 %v155
    %v157 = vand.u32 %v71, 4294901760
    %158 = vmatpush.msra.mxu0 %v157
    %v159 = vand.u32 %v67, 4294901760
    %160 = vmatpush.msra.mxu0 %v159
    %v161 = vand.u32 %v63, 4294901760
    %162 = vmatpush.msra.mxu0 %v161
    %v163 = vand.u32 %v59, 4294901760
    %164 = vmatpush.msra.mxu0 %v163
    %v165 = vand.u32 %v58, 4294901760
    %v166 = vsub.f32 %v58, %v165
    %v167 = vand.u32 %v166, 4294901760
    %v168 = vsub.f32 %v166, %v167
    %v169 = vand.u32 %v168, 4294901760
    %170 = vmatmul.f32.gmra.mxu0 %v169
    %v171 = vpop.f32.mrf.mxu0
    %v172 = vadd.f32 %v125, %v171
    %173 = vdwg.mxu0
    %v174 = vand.u32 %v119, 4294901760
    %v175 = vsub.f32 %v119, %v174
    %v176 = vand.u32 %v175, 4294901760
    %v177 = vsub.f32 %v175, %v176
    %v178 = vand.u32 %v177, 4294901760
    %179 = vmatpush.msra.mxu0 %v178
    %v180 = vand.u32 %v115, 4294901760
    %v181 = vsub.f32 %v115, %v180
    %v182 = vand.u32 %v181, 4294901760
    %v183 = vsub.f32 %v181, %v182
    %v184 = vand.u32 %v183, 4294901760
    %185 = vmatpush.msra.mxu0 %v184
    %v186 = vand.u32 %v111, 4294901760
    %v187 = vsub.f32 %v111, %v186
    %v188 = vand.u32 %v187, 4294901760
    %v189 = vsub.f32 %v187, %v188
    %v190 = vand.u32 %v189, 4294901760
    %191 = vmatpush.msra.mxu0 %v190
    %v192 = vand.u32 %v107, 4294901760
    %v193 = vsub.f32 %v107, %v192
    %v194 = vand.u32 %v193, 4294901760
    %v195 = vsub.f32 %v193, %v194
    %v196 = vand.u32 %v195, 4294901760
    %197 = vmatpush.msra.mxu0 %v196
    %v198 = vand.u32 %v103, 4294901760
    %v199 = vsub.f32 %v103, %v198
    %v200 = vand.u32 %v199, 4294901760
    %v201 = vsub.f32 %v199, %v200
    %v202 = vand.u32 %v201, 4294901760
    %203 = vmatpush.msra.mxu0 %v202
    %v204 = vand.u32 %v99, 4294901760
    %v205 = vsub.f32 %v99, %v204
    %v206 = vand.u32 %v205, 4294901760
    %v207 = vsub.f32 %v205, %v206
    %v208 = vand.u32 %v207, 4294901760
    %209 = vmatpush.msra.mxu0 %v208
    %v210 = vand.u32 %v95, 4294901760
    %v211 = vsub.f32 %v95, %v210
    %v212 = vand.u32 %v211, 4294901760
    %v213 = vsub.f32 %v211, %v212
    %v214 = vand.u32 %v213, 4294901760
    %215 = vmatpush.msra.mxu0 %v214
    %v216 = vand.u32 %v91, 4294901760
    %v217 = vsub.f32 %v91, %v216
    %v218 = vand.u32 %v217, 4294901760
    %v219 = vsub.f32 %v217, %v218
    %v220 = vand.u32 %v219, 4294901760
    %221 = vmatpush.msra.mxu0 %v220
    %v222 = vand.u32 %v87, 4294901760
    %v223 = vsub.f32 %v87, %v222
    %v224 = vand.u32 %v223, 4294901760
    %v225 = vsub.f32 %v223, %v224
    %v226 = vand.u32 %v225, 4294901760
    %227 = vmatpush.msra.mxu0 %v226
    %v228 = vand.u32 %v83, 4294901760
    %v229 = vsub.f32 %v83, %v228
    %v230 = vand.u32 %v229, 4294901760
    %v231 = vsub.f32 %v229, %v230
    %v232 = vand.u32 %v231, 4294901760
    %233 = vmatpush.msra.mxu0 %v232
    %v234 = vand.u32 %v79, 4294901760
    %v235 = vsub.f32 %v79, %v234
    %v236 = vand.u32 %v235, 4294901760
    %v237 = vsub.f32 %v235, %v236
    %v238 = vand.u32 %v237, 4294901760
    %239 = vmatpush.msra.mxu0 %v238
    %v240 = vand.u32 %v75, 4294901760
    %v241 = vsub.f32 %v75, %v240
    %v242 = vand.u32 %v241, 4294901760
    %v243 = vsub.f32 %v241, %v242
    %v244 = vand.u32 %v243, 4294901760
    %245 = vmatpush.msra.mxu0 %v244
    %v246 = vand.u32 %v71, 4294901760
    %v247 = vsub.f32 %v71, %v246
    %v248 = vand.u32 %v247, 4294901760
    %v249 = vsub.f32 %v247, %v248
    %v250 = vand.u32 %v249, 4294901760
    %251 = vmatpush.msra.mxu0 %v250
    %v252 = vand.u32 %v67, 4294901760
    %v253 = vsub.f32 %v67, %v252
    %v254 = vand.u32 %v253, 4294901760
    %v255 = vsub.f32 %v253, %v254
    %v256 = vand.u32 %v255, 4294901760
    %257 = vmatpush.msra.mxu0 %v256
    %v258 = vand.u32 %v63, 4294901760
    %v259 = vsub.f32 %v63, %v258
    %v260 = vand.u32 %v259, 4294901760
    %v261 = vsub.f32 %v259, %v260
    %v262 = vand.u32 %v261, 4294901760
    %263 = vmatpush.msra.mxu0 %v262
    %v264 = vand.u32 %v59, 4294901760
    %v265 = vsub.f32 %v59, %v264
    %v266 = vand.u32 %v265, 4294901760
    %v267 = vsub.f32 %v265, %v266
    %v268 = vand.u32 %v267, 4294901760
    %269 = vmatpush.msra.mxu0 %v268
    %v270 = vand.u32 %v58, 4294901760
    %271 = vmatmul.f32.gmra.mxu0 %v270
    %v272 = vpop.f32.mrf.mxu0
    %v273 = vadd.f32 %v172, %v272
    %274 = vdwg.mxu0
    %v275 = vand.u32 %v119, 4294901760
    %v276 = vsub.f32 %v119, %v275
    %277 = vmatpush.msra.mxu0 %v276
    %v278 = vand.u32 %v115, 4294901760
    %v279 = vsub.f32 %v115, %v278
    %280 = vmatpush.msra.mxu0 %v279
    %v281 = vand.u32 %v111, 4294901760
    %v282 = vsub.f32 %v111, %v281
    %283 = vmatpush.msra.mxu0 %v282
    %v284 = vand.u32 %v107, 4294901760
    %v285 = vsub.f32 %v107, %v284
    %286 = vmatpush.msra.mxu0 %v285
    %v287 = vand.u32 %v103, 4294901760
    %v288 = vsub.f32 %v103, %v287
    %289 = vmatpush.msra.mxu0 %v288
    %v290 = vand.u32 %v99, 4294901760
    %v291 = vsub.f32 %v99, %v290
    %292 = vmatpush.msra.mxu0 %v291
    %v293 = vand.u32 %v95, 4294901760
    %v294 = vsub.f32 %v95, %v293
    %295 = vmatpush.msra.mxu0 %v294
    %v296 = vand.u32 %v91, 4294901760
    %v297 = vsub.f32 %v91, %v296
    %298 = vmatpush.msra.mxu0 %v297
    %v299 = vand.u32 %v87, 4294901760
    %v300 = vsub.f32 %v87, %v299
    %301 = vmatpush.msra.mxu0 %v300
    %v302 = vand.u32 %v83, 4294901760
    %v303 = vsub.f32 %v83, %v302
    %304 = vmatpush.msra.mxu0 %v303
    %v305 = vand.u32 %v79, 4294901760
    %v306 = vsub.f32 %v79, %v305
    %307 = vmatpush.msra.mxu0 %v306
    %v308 = vand.u32 %v75, 4294901760
    %v309 = vsub.f32 %v75, %v308
    %310 = vmatpush.msra.mxu0 %v309
    %v311 = vand.u32 %v71, 4294901760
    %v312 = vsub.f32 %v71, %v311
    %313 = vmatpush.msra.mxu0 %v312
    %v314 = vand.u32 %v67, 4294901760
    %v315 = vsub.f32 %v67, %v314
    %316 = vmatpush.msra.mxu0 %v315
    %v317 = vand.u32 %v63, 4294901760
    %v318 = vsub.f32 %v63, %v317
    %319 = vmatpush.msra.mxu0 %v318
    %v320 = vand.u32 %v59, 4294901760
    %v321 = vsub.f32 %v59, %v320
    %322 = vmatpush.msra.mxu0 %v321
    %v323 = vand.u32 %v58, 4294901760
    %v324 = vsub.f32 %v58, %v323
    %325 = vmatmul.f32.gmra.mxu0 %v324
    %v326 = vpop.f32.mrf.mxu0
    %v327 = vadd.f32 %v273, %v326
    %328 = vdwg.mxu0
    %v329 = vand.u32 %v119, 4294901760
    %330 = vmatpush.msra.mxu0 %v329
    %v331 = vand.u32 %v115, 4294901760
    %332 = vmatpush.msra.mxu0 %v331
    %v333 = vand.u32 %v111, 4294901760
    %334 = vmatpush.msra.mxu0 %v333
    %v335 = vand.u32 %v107, 4294901760
    %336 = vmatpush.msra.mxu0 %v335
    %v337 = vand.u32 %v103, 4294901760
    %338 = vmatpush.msra.mxu0 %v337
    %v339 = vand.u32 %v99, 4294901760
    %340 = vmatpush.msra.mxu0 %v339
    %v341 = vand.u32 %v95, 4294901760
    %342 = vmatpush.msra.mxu0 %v341
    %v343 = vand.u32 %v91, 4294901760
    %344 = vmatpush.msra.mxu0 %v343
    %v345 = vand.u32 %v87, 4294901760
    %346 = vmatpush.msra.mxu0 %v345
    %v347 = vand.u32 %v83, 4294901760
    %348 = vmatpush.msra.mxu0 %v347
    %v349 = vand.u32 %v79, 4294901760
    %350 = vmatpush.msra.mxu0 %v349
    %v351 = vand.u32 %v75, 4294901760
    %352 = vmatpush.msra.mxu0 %v351
    %v353 = vand.u32 %v71, 4294901760
    %354 = vmatpush.msra.mxu0 %v353
    %v355 = vand.u32 %v67, 4294901760
    %356 = vmatpush.msra.mxu0 %v355
    %v357 = vand.u32 %v63, 4294901760
    %358 = vmatpush.msra.mxu0 %v357
    %v359 = vand.u32 %v59, 4294901760
    %360 = vmatpush.msra.mxu0 %v359
    %v361 = vand.u32 %v58, 4294901760
    %v362 = vsub.f32 %v58, %v361
    %v363 = vand.u32 %v362, 4294901760
    %364 = vmatmul.f32.gmra.mxu0 %v363
    %v365 = vpop.f32.mrf.mxu0
    %v366 = vadd.f32 %v327, %v365
    %367 = vdwg.mxu0
    %v368 = vand.u32 %v119, 4294901760
    %v369 = vsub.f32 %v119, %v368
    %v370 = vand.u32 %v369, 4294901760
    %371 = vmatpush.msra.mxu0 %v370
    %v372 = vand.u32 %v115, 4294901760
    %v373 = vsub.f32 %v115, %v372
    %v374 = vand.u32 %v373, 4294901760
    %375 = vmatpush.msra.mxu0 %v374
    %v376 = vand.u32 %v111, 4294901760
    %v377 = vsub.f32 %v111, %v376
    %v378 = vand.u32 %v377, 4294901760
    %379 = vmatpush.msra.mxu0 %v378
    %v380 = vand.u32 %v107, 4294901760
    %v381 = vsub.f32 %v107, %v380
    %v382 = vand.u32 %v381, 4294901760
    %383 = vmatpush.msra.mxu0 %v382
    %v384 = vand.u32 %v103, 4294901760
    %v385 = vsub.f32 %v103, %v384
    %v386 = vand.u32 %v385, 4294901760
    %387 = vmatpush.msra.mxu0 %v386
    %v388 = vand.u32 %v99, 4294901760
    %v389 = vsub.f32 %v99, %v388
    %v390 = vand.u32 %v389, 4294901760
    %391 = vmatpush.msra.mxu0 %v390
    %v392 = vand.u32 %v95, 4294901760
    %v393 = vsub.f32 %v95, %v392
    %v394 = vand.u32 %v393, 4294901760
    %395 = vmatpush.msra.mxu0 %v394
    %v396 = vand.u32 %v91, 4294901760
    %v397 = vsub.f32 %v91, %v396
    %v398 = vand.u32 %v397, 4294901760
    %399 = vmatpush.msra.mxu0 %v398
    %v400 = vand.u32 %v87, 4294901760
    %v401 = vsub.f32 %v87, %v400
    %v402 = vand.u32 %v401, 4294901760
    %403 = vmatpush.msra.mxu0 %v402
    %v404 = vand.u32 %v83, 4294901760
    %v405 = vsub.f32 %v83, %v404
    %v406 = vand.u32 %v405, 4294901760
    %407 = vmatpush.msra.mxu0 %v406
    %v408 = vand.u32 %v79, 4294901760
    %v409 = vsub.f32 %v79, %v408
    %v410 = vand.u32 %v409, 4294901760
    %411 = vmatpush.msra.mxu0 %v410
    %v412 = vand.u32 %v75, 4294901760
    %v413 = vsub.f32 %v75, %v412
    %v414 = vand.u32 %v413, 4294901760
    %415 = vmatpush.msra.mxu0 %v414
    %v416 = vand.u32 %v71, 4294901760
    %v417 = vsub.f32 %v71, %v416
    %v418 = vand.u32 %v417, 4294901760
    %419 = vmatpush.msra.mxu0 %v418
    %v420 = vand.u32 %v67, 4294901760
    %v421 = vsub.f32 %v67, %v420
    %v422 = vand.u32 %v421, 4294901760
    %423 = vmatpush.msra.mxu0 %v422
    %v424 = vand.u32 %v63, 4294901760
    %v425 = vsub.f32 %v63, %v424
    %v426 = vand.u32 %v425, 4294901760
    %427 = vmatpush.msra.mxu0 %v426
    %v428 = vand.u32 %v59, 4294901760
    %v429 = vsub.f32 %v59, %v428
    %v430 = vand.u32 %v429, 4294901760
    %431 = vmatpush.msra.mxu0 %v430
    %v432 = vand.u32 %v58, 4294901760
    %433 = vmatmul.f32.gmra.mxu0 %v432
    %v434 = vpop.f32.mrf.mxu0
    %v435 = vadd.f32 %v366, %v434
    %436 = vdwg.mxu0
    %v437 = vand.u32 %v119, 4294901760
    %438 = vmatpush.msra.mxu0 %v437
    %v439 = vand.u32 %v115, 4294901760
    %440 = vmatpush.msra.mxu0 %v439
    %v441 = vand.u32 %v111, 4294901760
    %442 = vmatpush.msra.mxu0 %v441
    %v443 = vand.u32 %v107, 4294901760
    %444 = vmatpush.msra.mxu0 %v443
    %v445 = vand.u32 %v103, 4294901760
    %446 = vmatpush.msra.mxu0 %v445
    %v447 = vand.u32 %v99, 4294901760
    %448 = vmatpush.msra.mxu0 %v447
    %v449 = vand.u32 %v95, 4294901760
    %450 = vmatpush.msra.mxu0 %v449
    %v451 = vand.u32 %v91, 4294901760
    %452 = vmatpush.msra.mxu0 %v451
    %v453 = vand.u32 %v87, 4294901760
    %454 = vmatpush.msra.mxu0 %v453
    %v455 = vand.u32 %v83, 4294901760
    %456 = vmatpush.msra.mxu0 %v455
    %v457 = vand.u32 %v79, 4294901760
    %458 = vmatpush.msra.mxu0 %v457
    %v459 = vand.u32 %v75, 4294901760
    %460 = vmatpush.msra.mxu0 %v459
    %v461 = vand.u32 %v71, 4294901760
    %462 = vmatpush.msra.mxu0 %v461
    %v463 = vand.u32 %v67, 4294901760
    %464 = vmatpush.msra.mxu0 %v463
    %v465 = vand.u32 %v63, 4294901760
    %466 = vmatpush.msra.mxu0 %v465
    %v467 = vand.u32 %v59, 4294901760
    %468 = vmatpush.msra.mxu0 %v467
    %v469 = vand.u32 %v58, 4294901760
    %470 = vmatmul.f32.gmra.mxu0 %v469
    %v471 = vpop.f32.mrf.mxu0
    %v472 = vadd.f32 %v435, %v471
    %473 = vdwg.mxu0
    %v474 = vand.u32 %v120, 4294901760
    %475 = vmatpush.msra.mxu0 %v474
    %v476 = vand.u32 %v116, 4294901760
    %477 = vmatpush.msra.mxu0 %v476
    %v478 = vand.u32 %v112, 4294901760
    %479 = vmatpush.msra.mxu0 %v478
    %v480 = vand.u32 %v108, 4294901760
    %481 = vmatpush.msra.mxu0 %v480
    %v482 = vand.u32 %v104, 4294901760
    %483 = vmatpush.msra.mxu0 %v482
    %v484 = vand.u32 %v100, 4294901760
    %485 = vmatpush.msra.mxu0 %v484
    %v486 = vand.u32 %v96, 4294901760
    %487 = vmatpush.msra.mxu0 %v486
    %v488 = vand.u32 %v92, 4294901760
    %489 = vmatpush.msra.mxu0 %v488
    %v490 = vand.u32 %v88, 4294901760
    %491 = vmatpush.msra.mxu0 %v490
    %v492 = vand.u32 %v84, 4294901760
    %493 = vmatpush.msra.mxu0 %v492
    %v494 = vand.u32 %v80, 4294901760
    %495 = vmatpush.msra.mxu0 %v494
    %v496 = vand.u32 %v76, 4294901760
    %497 = vmatpush.msra.mxu0 %v496
    %v498 = vand.u32 %v72, 4294901760
    %499 = vmatpush.msra.mxu0 %v498
    %v500 = vand.u32 %v68, 4294901760
    %501 = vmatpush.msra.mxu0 %v500
    %v502 = vand.u32 %v64, 4294901760
    %503 = vmatpush.msra.mxu0 %v502
    %v504 = vand.u32 %v60, 4294901760
    %505 = vmatpush.msra.mxu0 %v504
    %v506 = vand.u32 %v58, 4294901760
    %v507 = vsub.f32 %v58, %v506
    %v508 = vand.u32 %v507, 4294901760
    %v509 = vsub.f32 %v507, %v508
    %v510 = vand.u32 %v509, 4294901760
    %511 = vmatmul.f32.gmra.mxu0 %v510
    %v512 = vpop.f32.mrf.mxu0
    %v513 = vadd.f32 %v126, %v512
    %514 = vdwg.mxu0
    %v515 = vand.u32 %v120, 4294901760
    %v516 = vsub.f32 %v120, %v515
    %v517 = vand.u32 %v516, 4294901760
    %v518 = vsub.f32 %v516, %v517
    %v519 = vand.u32 %v518, 4294901760
    %520 = vmatpush.msra.mxu0 %v519
    %v521 = vand.u32 %v116, 4294901760
    %v522 = vsub.f32 %v116, %v521
    %v523 = vand.u32 %v522, 4294901760
    %v524 = vsub.f32 %v522, %v523
    %v525 = vand.u32 %v524, 4294901760
    %526 = vmatpush.msra.mxu0 %v525
    %v527 = vand.u32 %v112, 4294901760
    %v528 = vsub.f32 %v112, %v527
    %v529 = vand.u32 %v528, 4294901760
    %v530 = vsub.f32 %v528, %v529
    %v531 = vand.u32 %v530, 4294901760
    %532 = vmatpush.msra.mxu0 %v531
    %v533 = vand.u32 %v108, 4294901760
    %v534 = vsub.f32 %v108, %v533
    %v535 = vand.u32 %v534, 4294901760
    %v536 = vsub.f32 %v534, %v535
    %v537 = vand.u32 %v536, 4294901760
    %538 = vmatpush.msra.mxu0 %v537
    %v539 = vand.u32 %v104, 4294901760
    %v540 = vsub.f32 %v104, %v539
    %v541 = vand.u32 %v540, 4294901760
    %v542 = vsub.f32 %v540, %v541
    %v543 = vand.u32 %v542, 4294901760
    %544 = vmatpush.msra.mxu0 %v543
    %v545 = vand.u32 %v100, 4294901760
    %v546 = vsub.f32 %v100, %v545
    %v547 = vand.u32 %v546, 4294901760
    %v548 = vsub.f32 %v546, %v547
    %v549 = vand.u32 %v548, 4294901760
    %550 = vmatpush.msra.mxu0 %v549
    %v551 = vand.u32 %v96, 4294901760
    %v552 = vsub.f32 %v96, %v551
    %v553 = vand.u32 %v552, 4294901760
    %v554 = vsub.f32 %v552, %v553
    %v555 = vand.u32 %v554, 4294901760
    %556 = vmatpush.msra.mxu0 %v555
    %v557 = vand.u32 %v92, 4294901760
    %v558 = vsub.f32 %v92, %v557
    %v559 = vand.u32 %v558, 4294901760
    %v560 = vsub.f32 %v558, %v559
    %v561 = vand.u32 %v560, 4294901760
    %562 = vmatpush.msra.mxu0 %v561
    %v563 = vand.u32 %v88, 4294901760
    %v564 = vsub.f32 %v88, %v563
    %v565 = vand.u32 %v564, 4294901760
    %v566 = vsub.f32 %v564, %v565
    %v567 = vand.u32 %v566, 4294901760
    %568 = vmatpush.msra.mxu0 %v567
    %v569 = vand.u32 %v84, 4294901760
    %v570 = vsub.f32 %v84, %v569
    %v571 = vand.u32 %v570, 4294901760
    %v572 = vsub.f32 %v570, %v571
    %v573 = vand.u32 %v572, 4294901760
    %574 = vmatpush.msra.mxu0 %v573
    %v575 = vand.u32 %v80, 4294901760
    %v576 = vsub.f32 %v80, %v575
    %v577 = vand.u32 %v576, 4294901760
    %v578 = vsub.f32 %v576, %v577
    %v579 = vand.u32 %v578, 4294901760
    %580 = vmatpush.msra.mxu0 %v579
    %v581 = vand.u32 %v76, 4294901760
    %v582 = vsub.f32 %v76, %v581
    %v583 = vand.u32 %v582, 4294901760
    %v584 = vsub.f32 %v582, %v583
    %v585 = vand.u32 %v584, 4294901760
    %586 = vmatpush.msra.mxu0 %v585
    %v587 = vand.u32 %v72, 4294901760
    %v588 = vsub.f32 %v72, %v587
    %v589 = vand.u32 %v588, 4294901760
    %v590 = vsub.f32 %v588, %v589
    %v591 = vand.u32 %v590, 4294901760
    %592 = vmatpush.msra.mxu0 %v591
    %v593 = vand.u32 %v68, 4294901760
    %v594 = vsub.f32 %v68, %v593
    %v595 = vand.u32 %v594, 4294901760
    %v596 = vsub.f32 %v594, %v595
    %v597 = vand.u32 %v596, 4294901760
    %598 = vmatpush.msra.mxu0 %v597
    %v599 = vand.u32 %v64, 4294901760
    %v600 = vsub.f32 %v64, %v599
    %v601 = vand.u32 %v600, 4294901760
    %v602 = vsub.f32 %v600, %v601
    %v603 = vand.u32 %v602, 4294901760
    %604 = vmatpush.msra.mxu0 %v603
    %v605 = vand.u32 %v60, 4294901760
    %v606 = vsub.f32 %v60, %v605
    %v607 = vand.u32 %v606, 4294901760
    %v608 = vsub.f32 %v606, %v607
    %v609 = vand.u32 %v608, 4294901760
    %610 = vmatpush.msra.mxu0 %v609
    %v611 = vand.u32 %v58, 4294901760
    %612 = vmatmul.f32.gmra.mxu0 %v611
    %v613 = vpop.f32.mrf.mxu0
    %v614 = vadd.f32 %v513, %v613
    %615 = vdwg.mxu0
    %v616 = vand.u32 %v120, 4294901760
    %v617 = vsub.f32 %v120, %v616
    %618 = vmatpush.msra.mxu0 %v617
    %v619 = vand.u32 %v116, 4294901760
    %v620 = vsub.f32 %v116, %v619
    %621 = vmatpush.msra.mxu0 %v620
    %v622 = vand.u32 %v112, 4294901760
    %v623 = vsub.f32 %v112, %v622
    %624 = vmatpush.msra.mxu0 %v623
    %v625 = vand.u32 %v108, 4294901760
    %v626 = vsub.f32 %v108, %v625
    %627 = vmatpush.msra.mxu0 %v626
    %v628 = vand.u32 %v104, 4294901760
    %v629 = vsub.f32 %v104, %v628
    %630 = vmatpush.msra.mxu0 %v629
    %v631 = vand.u32 %v100, 4294901760
    %v632 = vsub.f32 %v100, %v631
    %633 = vmatpush.msra.mxu0 %v632
    %v634 = vand.u32 %v96, 4294901760
    %v635 = vsub.f32 %v96, %v634
    %636 = vmatpush.msra.mxu0 %v635
    %v637 = vand.u32 %v92, 4294901760
    %v638 = vsub.f32 %v92, %v637
    %639 = vmatpush.msra.mxu0 %v638
    %v640 = vand.u32 %v88, 4294901760
    %v641 = vsub.f32 %v88, %v640
    %642 = vmatpush.msra.mxu0 %v641
    %v643 = vand.u32 %v84, 4294901760
    %v644 = vsub.f32 %v84, %v643
    %645 = vmatpush.msra.mxu0 %v644
    %v646 = vand.u32 %v80, 4294901760
    %v647 = vsub.f32 %v80, %v646
    %648 = vmatpush.msra.mxu0 %v647
    %v649 = vand.u32 %v76, 4294901760
    %v650 = vsub.f32 %v76, %v649
    %651 = vmatpush.msra.mxu0 %v650
    %v652 = vand.u32 %v72, 4294901760
    %v653 = vsub.f32 %v72, %v652
    %654 = vmatpush.msra.mxu0 %v653
    %v655 = vand.u32 %v68, 4294901760
    %v656 = vsub.f32 %v68, %v655
    %657 = vmatpush.msra.mxu0 %v656
    %v658 = vand.u32 %v64, 4294901760
    %v659 = vsub.f32 %v64, %v658
    %660 = vmatpush.msra.mxu0 %v659
    %v661 = vand.u32 %v60, 4294901760
    %v662 = vsub.f32 %v60, %v661
    %663 = vmatpush.msra.mxu0 %v662
    %v664 = vand.u32 %v58, 4294901760
    %v665 = vsub.f32 %v58, %v664
    %666 = vmatmul.f32.gmra.mxu0 %v665
    %v667 = vpop.f32.mrf.mxu0
    %v668 = vadd.f32 %v614, %v667
    %669 = vdwg.mxu0
    %v670 = vand.u32 %v120, 4294901760
    %671 = vmatpush.msra.mxu0 %v670
    %v672 = vand.u32 %v116, 4294901760
    %673 = vmatpush.msra.mxu0 %v672
    %v674 = vand.u32 %v112, 4294901760
    %675 = vmatpush.msra.mxu0 %v674
    %v676 = vand.u32 %v108, 4294901760
    %677 = vmatpush.msra.mxu0 %v676
    %v678 = vand.u32 %v104, 4294901760
    %679 = vmatpush.msra.mxu0 %v678
    %v680 = vand.u32 %v100, 4294901760
    %681 = vmatpush.msra.mxu0 %v680
    %v682 = vand.u32 %v96, 4294901760
    %683 = vmatpush.msra.mxu0 %v682
    %v684 = vand.u32 %v92, 4294901760
    %685 = vmatpush.msra.mxu0 %v684
    %v686 = vand.u32 %v88, 4294901760
    %687 = vmatpush.msra.mxu0 %v686
    %v688 = vand.u32 %v84, 4294901760
    %689 = vmatpush.msra.mxu0 %v688
    %v690 = vand.u32 %v80, 4294901760
    %691 = vmatpush.msra.mxu0 %v690
    %v692 = vand.u32 %v76, 4294901760
    %693 = vmatpush.msra.mxu0 %v692
    %v694 = vand.u32 %v72, 4294901760
    %695 = vmatpush.msra.mxu0 %v694
    %v696 = vand.u32 %v68, 4294901760
    %697 = vmatpush.msra.mxu0 %v696
    %v698 = vand.u32 %v64, 4294901760
    %699 = vmatpush.msra.mxu0 %v698
    %v700 = vand.u32 %v60, 4294901760
    %701 = vmatpush.msra.mxu0 %v700
    %v702 = vand.u32 %v58, 4294901760
    %v703 = vsub.f32 %v58, %v702
    %v704 = vand.u32 %v703, 4294901760
    %705 = vmatmul.f32.gmra.mxu0 %v704
    %v706 = vpop.f32.mrf.mxu0
    %v707 = vadd.f32 %v668, %v706
    %708 = vdwg.mxu0
    %v709 = vand.u32 %v120, 4294901760
    %v710 = vsub.f32 %v120, %v709
    %v711 = vand.u32 %v710, 4294901760
    %712 = vmatpush.msra.mxu0 %v711
    %v713 = vand.u32 %v116, 4294901760
    %v714 = vsub.f32 %v116, %v713
    %v715 = vand.u32 %v714, 4294901760
    %716 = vmatpush.msra.mxu0 %v715
    %v717 = vand.u32 %v112, 4294901760
    %v718 = vsub.f32 %v112, %v717
    %v719 = vand.u32 %v718, 4294901760
    %720 = vmatpush.msra.mxu0 %v719
    %v721 = vand.u32 %v108, 4294901760
    %v722 = vsub.f32 %v108, %v721
    %v723 = vand.u32 %v722, 4294901760
    %724 = vmatpush.msra.mxu0 %v723
    %v725 = vand.u32 %v104, 4294901760
    %v726 = vsub.f32 %v104, %v725
    %v727 = vand.u32 %v726, 4294901760
    %728 = vmatpush.msra.mxu0 %v727
    %v729 = vand.u32 %v100, 4294901760
    %v730 = vsub.f32 %v100, %v729
    %v731 = vand.u32 %v730, 4294901760
    %732 = vmatpush.msra.mxu0 %v731
    %v733 = vand.u32 %v96, 4294901760
    %v734 = vsub.f32 %v96, %v733
    %v735 = vand.u32 %v734, 4294901760
    %736 = vmatpush.msra.mxu0 %v735
    %v737 = vand.u32 %v92, 4294901760
    %v738 = vsub.f32 %v92, %v737
    %v739 = vand.u32 %v738, 4294901760
    %740 = vmatpush.msra.mxu0 %v739
    %v741 = vand.u32 %v88, 4294901760
    %v742 = vsub.f32 %v88, %v741
    %v743 = vand.u32 %v742, 4294901760
    %744 = vmatpush.msra.mxu0 %v743
    %v745 = vand.u32 %v84, 4294901760
    %v746 = vsub.f32 %v84, %v745
    %v747 = vand.u32 %v746, 4294901760
    %748 = vmatpush.msra.mxu0 %v747
    %v749 = vand.u32 %v80, 4294901760
    %v750 = vsub.f32 %v80, %v749
    %v751 = vand.u32 %v750, 4294901760
    %752 = vmatpush.msra.mxu0 %v751
    %v753 = vand.u32 %v76, 4294901760
    %v754 = vsub.f32 %v76, %v753
    %v755 = vand.u32 %v754, 4294901760
    %756 = vmatpush.msra.mxu0 %v755
    %v757 = vand.u32 %v72, 4294901760
    %v758 = vsub.f32 %v72, %v757
    %v759 = vand.u32 %v758, 4294901760
    %760 = vmatpush.msra.mxu0 %v759
    %v761 = vand.u32 %v68, 4294901760
    %v762 = vsub.f32 %v68, %v761
    %v763 = vand.u32 %v762, 4294901760
    %764 = vmatpush.msra.mxu0 %v763
    %v765 = vand.u32 %v64, 4294901760
    %v766 = vsub.f32 %v64, %v765
    %v767 = vand.u32 %v766, 4294901760
    %768 = vmatpush.msra.mxu0 %v767
    %v769 = vand.u32 %v60, 4294901760
    %v770 = vsub.f32 %v60, %v769
    %v771 = vand.u32 %v770, 4294901760
    %772 = vmatpush.msra.mxu0 %v771
    %v773 = vand.u32 %v58, 4294901760
    %774 = vmatmul.f32.gmra.mxu0 %v773
    %v775 = vpop.f32.mrf.mxu0
    %v776 = vadd.f32 %v707, %v775
    %777 = vdwg.mxu0
    %v778 = vand.u32 %v120, 4294901760
    %779 = vmatpush.msra.mxu0 %v778
    %v780 = vand.u32 %v116, 4294901760
    %781 = vmatpush.msra.mxu0 %v780
    %v782 = vand.u32 %v112, 4294901760
    %783 = vmatpush.msra.mxu0 %v782
    %v784 = vand.u32 %v108, 4294901760
    %785 = vmatpush.msra.mxu0 %v784
    %v786 = vand.u32 %v104, 4294901760
    %787 = vmatpush.msra.mxu0 %v786
    %v788 = vand.u32 %v100, 4294901760
    %789 = vmatpush.msra.mxu0 %v788
    %v790 = vand.u32 %v96, 4294901760
    %791 = vmatpush.msra.mxu0 %v790
    %v792 = vand.u32 %v92, 4294901760
    %793 = vmatpush.msra.mxu0 %v792
    %v794 = vand.u32 %v88, 4294901760
    %795 = vmatpush.msra.mxu0 %v794
    %v796 = vand.u32 %v84, 4294901760
    %797 = vmatpush.msra.mxu0 %v796
    %v798 = vand.u32 %v80, 4294901760
    %799 = vmatpush.msra.mxu0 %v798
    %v800 = vand.u32 %v76, 4294901760
    %801 = vmatpush.msra.mxu0 %v800
    %v802 = vand.u32 %v72, 4294901760
    %803 = vmatpush.msra.mxu0 %v802
    %v804 = vand.u32 %v68, 4294901760
    %805 = vmatpush.msra.mxu0 %v804
    %v806 = vand.u32 %v64, 4294901760
    %807 = vmatpush.msra.mxu0 %v806
    %v808 = vand.u32 %v60, 4294901760
    %809 = vmatpush.msra.mxu0 %v808
    %v810 = vand.u32 %v58, 4294901760
    %811 = vmatmul.f32.gmra.mxu0 %v810
    %v812 = vpop.f32.mrf.mxu0
    %v813 = vadd.f32 %v776, %v812
    %814 = vdwg.mxu0
    %v815 = vand.u32 %v121, 4294901760
    %816 = vmatpush.msra.mxu0 %v815
    %v817 = vand.u32 %v117, 4294901760
    %818 = vmatpush.msra.mxu0 %v817
    %v819 = vand.u32 %v113, 4294901760
    %820 = vmatpush.msra.mxu0 %v819
    %v821 = vand.u32 %v109, 4294901760
    %822 = vmatpush.msra.mxu0 %v821
    %v823 = vand.u32 %v105, 4294901760
    %824 = vmatpush.msra.mxu0 %v823
    %v825 = vand.u32 %v101, 4294901760
    %826 = vmatpush.msra.mxu0 %v825
    %v827 = vand.u32 %v97, 4294901760
    %828 = vmatpush.msra.mxu0 %v827
    %v829 = vand.u32 %v93, 4294901760
    %830 = vmatpush.msra.mxu0 %v829
    %v831 = vand.u32 %v89, 4294901760
    %832 = vmatpush.msra.mxu0 %v831
    %v833 = vand.u32 %v85, 4294901760
    %834 = vmatpush.msra.mxu0 %v833
    %v835 = vand.u32 %v81, 4294901760
    %836 = vmatpush.msra.mxu0 %v835
    %v837 = vand.u32 %v77, 4294901760
    %838 = vmatpush.msra.mxu0 %v837
    %v839 = vand.u32 %v73, 4294901760
    %840 = vmatpush.msra.mxu0 %v839
    %v841 = vand.u32 %v69, 4294901760
    %842 = vmatpush.msra.mxu0 %v841
    %v843 = vand.u32 %v65, 4294901760
    %844 = vmatpush.msra.mxu0 %v843
    %v845 = vand.u32 %v61, 4294901760
    %846 = vmatpush.msra.mxu0 %v845
    %v847 = vand.u32 %v58, 4294901760
    %v848 = vsub.f32 %v58, %v847
    %v849 = vand.u32 %v848, 4294901760
    %v850 = vsub.f32 %v848, %v849
    %v851 = vand.u32 %v850, 4294901760
    %852 = vmatmul.f32.gmra.mxu0 %v851
    %v853 = vpop.f32.mrf.mxu0
    %v854 = vadd.f32 %v127, %v853
    %855 = vdwg.mxu0
    %v856 = vand.u32 %v121, 4294901760
    %v857 = vsub.f32 %v121, %v856
    %v858 = vand.u32 %v857, 4294901760
    %v859 = vsub.f32 %v857, %v858
    %v860 = vand.u32 %v859, 4294901760
    %861 = vmatpush.msra.mxu0 %v860
    %v862 = vand.u32 %v117, 4294901760
    %v863 = vsub.f32 %v117, %v862
    %v864 = vand.u32 %v863, 4294901760
    %v865 = vsub.f32 %v863, %v864
    %v866 = vand.u32 %v865, 4294901760
    %867 = vmatpush.msra.mxu0 %v866
    %v868 = vand.u32 %v113, 4294901760
    %v869 = vsub.f32 %v113, %v868
    %v870 = vand.u32 %v869, 4294901760
    %v871 = vsub.f32 %v869, %v870
    %v872 = vand.u32 %v871, 4294901760
    %873 = vmatpush.msra.mxu0 %v872
    %v874 = vand.u32 %v109, 4294901760
    %v875 = vsub.f32 %v109, %v874
    %v876 = vand.u32 %v875, 4294901760
    %v877 = vsub.f32 %v875, %v876
    %v878 = vand.u32 %v877, 4294901760
    %879 = vmatpush.msra.mxu0 %v878
    %v880 = vand.u32 %v105, 4294901760
    %v881 = vsub.f32 %v105, %v880
    %v882 = vand.u32 %v881, 4294901760
    %v883 = vsub.f32 %v881, %v882
    %v884 = vand.u32 %v883, 4294901760
    %885 = vmatpush.msra.mxu0 %v884
    %v886 = vand.u32 %v101, 4294901760
    %v887 = vsub.f32 %v101, %v886
    %v888 = vand.u32 %v887, 4294901760
    %v889 = vsub.f32 %v887, %v888
    %v890 = vand.u32 %v889, 4294901760
    %891 = vmatpush.msra.mxu0 %v890
    %v892 = vand.u32 %v97, 4294901760
    %v893 = vsub.f32 %v97, %v892
    %v894 = vand.u32 %v893, 4294901760
    %v895 = vsub.f32 %v893, %v894
    %v896 = vand.u32 %v895, 4294901760
    %897 = vmatpush.msra.mxu0 %v896
    %v898 = vand.u32 %v93, 4294901760
    %v899 = vsub.f32 %v93, %v898
    %v900 = vand.u32 %v899, 4294901760
    %v901 = vsub.f32 %v899, %v900
    %v902 = vand.u32 %v901, 4294901760
    %903 = vmatpush.msra.mxu0 %v902
    %v904 = vand.u32 %v89, 4294901760
    %v905 = vsub.f32 %v89, %v904
    %v906 = vand.u32 %v905, 4294901760
    %v907 = vsub.f32 %v905, %v906
    %v908 = vand.u32 %v907, 4294901760
    %909 = vmatpush.msra.mxu0 %v908
    %v910 = vand.u32 %v85, 4294901760
    %v911 = vsub.f32 %v85, %v910
    %v912 = vand.u32 %v911, 4294901760
    %v913 = vsub.f32 %v911, %v912
    %v914 = vand.u32 %v913, 4294901760
    %915 = vmatpush.msra.mxu0 %v914
    %v916 = vand.u32 %v81, 4294901760
    %v917 = vsub.f32 %v81, %v916
    %v918 = vand.u32 %v917, 4294901760
    %v919 = vsub.f32 %v917, %v918
    %v920 = vand.u32 %v919, 4294901760
    %921 = vmatpush.msra.mxu0 %v920
    %v922 = vand.u32 %v77, 4294901760
    %v923 = vsub.f32 %v77, %v922
    %v924 = vand.u32 %v923, 4294901760
    %v925 = vsub.f32 %v923, %v924
    %v926 = vand.u32 %v925, 4294901760
    %927 = vmatpush.msra.mxu0 %v926
    %v928 = vand.u32 %v73, 4294901760
    %v929 = vsub.f32 %v73, %v928
    %v930 = vand.u32 %v929, 4294901760
    %v931 = vsub.f32 %v929, %v930
    %v932 = vand.u32 %v931, 4294901760
    %933 = vmatpush.msra.mxu0 %v932
    %v934 = vand.u32 %v69, 4294901760
    %v935 = vsub.f32 %v69, %v934
    %v936 = vand.u32 %v935, 4294901760
    %v937 = vsub.f32 %v935, %v936
    %v938 = vand.u32 %v937, 4294901760
    %939 = vmatpush.msra.mxu0 %v938
    %v940 = vand.u32 %v65, 4294901760
    %v941 = vsub.f32 %v65, %v940
    %v942 = vand.u32 %v941, 4294901760
    %v943 = vsub.f32 %v941, %v942
    %v944 = vand.u32 %v943, 4294901760
    %945 = vmatpush.msra.mxu0 %v944
    %v946 = vand.u32 %v61, 4294901760
    %v947 = vsub.f32 %v61, %v946
    %v948 = vand.u32 %v947, 4294901760
    %v949 = vsub.f32 %v947, %v948
    %v950 = vand.u32 %v949, 4294901760
    %951 = vmatpush.msra.mxu0 %v950
    %v952 = vand.u32 %v58, 4294901760
    %953 = vmatmul.f32.gmra.mxu0 %v952
    %v954 = vpop.f32.mrf.mxu0
    %v955 = vadd.f32 %v854, %v954
    %956 = vdwg.mxu0
    %v957 = vand.u32 %v121, 4294901760
    %v958 = vsub.f32 %v121, %v957
    %959 = vmatpush.msra.mxu0 %v958
    %v960 = vand.u32 %v117, 4294901760
    %v961 = vsub.f32 %v117, %v960
    %962 = vmatpush.msra.mxu0 %v961
    %v963 = vand.u32 %v113, 4294901760
    %v964 = vsub.f32 %v113, %v963
    %965 = vmatpush.msra.mxu0 %v964
    %v966 = vand.u32 %v109, 4294901760
    %v967 = vsub.f32 %v109, %v966
    %968 = vmatpush.msra.mxu0 %v967
    %v969 = vand.u32 %v105, 4294901760
    %v970 = vsub.f32 %v105, %v969
    %971 = vmatpush.msra.mxu0 %v970
    %v972 = vand.u32 %v101, 4294901760
    %v973 = vsub.f32 %v101, %v972
    %974 = vmatpush.msra.mxu0 %v973
    %v975 = vand.u32 %v97, 4294901760
    %v976 = vsub.f32 %v97, %v975
    %977 = vmatpush.msra.mxu0 %v976
    %v978 = vand.u32 %v93, 4294901760
    %v979 = vsub.f32 %v93, %v978
    %980 = vmatpush.msra.mxu0 %v979
    %v981 = vand.u32 %v89, 4294901760
    %v982 = vsub.f32 %v89, %v981
    %983 = vmatpush.msra.mxu0 %v982
    %v984 = vand.u32 %v85, 4294901760
    %v985 = vsub.f32 %v85, %v984
    %986 = vmatpush.msra.mxu0 %v985
    %v987 = vand.u32 %v81, 4294901760
    %v988 = vsub.f32 %v81, %v987
    %989 = vmatpush.msra.mxu0 %v988
    %v990 = vand.u32 %v77, 4294901760
    %v991 = vsub.f32 %v77, %v990
    %992 = vmatpush.msra.mxu0 %v991
    %v993 = vand.u32 %v73, 4294901760
    %v994 = vsub.f32 %v73, %v993
    %995 = vmatpush.msra.mxu0 %v994
    %v996 = vand.u32 %v69, 4294901760
    %v997 = vsub.f32 %v69, %v996
    %998 = vmatpush.msra.mxu0 %v997
    %v999 = vand.u32 %v65, 4294901760
    %v1000 = vsub.f32 %v65, %v999
    %1001 = vmatpush.msra.mxu0 %v1000
    %v1002 = vand.u32 %v61, 4294901760
    %v1003 = vsub.f32 %v61, %v1002
    %1004 = vmatpush.msra.mxu0 %v1003
    %v1005 = vand.u32 %v58, 4294901760
    %v1006 = vsub.f32 %v58, %v1005
    %1007 = vmatmul.f32.gmra.mxu0 %v1006
    %v1008 = vpop.f32.mrf.mxu0
    %v1009 = vadd.f32 %v955, %v1008
    %1010 = vdwg.mxu0
    %v1011 = vand.u32 %v121, 4294901760
    %1012 = vmatpush.msra.mxu0 %v1011
    %v1013 = vand.u32 %v117, 4294901760
    %1014 = vmatpush.msra.mxu0 %v1013
    %v1015 = vand.u32 %v113, 4294901760
    %1016 = vmatpush.msra.mxu0 %v1015
    %v1017 = vand.u32 %v109, 4294901760
    %1018 = vmatpush.msra.mxu0 %v1017
    %v1019 = vand.u32 %v105, 4294901760
    %1020 = vmatpush.msra.mxu0 %v1019
    %v1021 = vand.u32 %v101, 4294901760
    %1022 = vmatpush.msra.mxu0 %v1021
    %v1023 = vand.u32 %v97, 4294901760
    %1024 = vmatpush.msra.mxu0 %v1023
    %v1025 = vand.u32 %v93, 4294901760
    %1026 = vmatpush.msra.mxu0 %v1025
    %v1027 = vand.u32 %v89, 4294901760
    %1028 = vmatpush.msra.mxu0 %v1027
    %v1029 = vand.u32 %v85, 4294901760
    %1030 = vmatpush.msra.mxu0 %v1029
    %v1031 = vand.u32 %v81, 4294901760
    %1032 = vmatpush.msra.mxu0 %v1031
    %v1033 = vand.u32 %v77, 4294901760
    %1034 = vmatpush.msra.mxu0 %v1033
    %v1035 = vand.u32 %v73, 4294901760
    %1036 = vmatpush.msra.mxu0 %v1035
    %v1037 = vand.u32 %v69, 4294901760
    %1038 = vmatpush.msra.mxu0 %v1037
    %v1039 = vand.u32 %v65, 4294901760
    %1040 = vmatpush.msra.mxu0 %v1039
    %v1041 = vand.u32 %v61, 4294901760
    %1042 = vmatpush.msra.mxu0 %v1041
    %v1043 = vand.u32 %v58, 4294901760
    %v1044 = vsub.f32 %v58, %v1043
    %v1045 = vand.u32 %v1044, 4294901760
    %1046 = vmatmul.f32.gmra.mxu0 %v1045
    %v1047 = vpop.f32.mrf.mxu0
    %v1048 = vadd.f32 %v1009, %v1047
    %1049 = vdwg.mxu0
    %v1050 = vand.u32 %v121, 4294901760
    %v1051 = vsub.f32 %v121, %v1050
    %v1052 = vand.u32 %v1051, 4294901760
    %1053 = vmatpush.msra.mxu0 %v1052
    %v1054 = vand.u32 %v117, 4294901760
    %v1055 = vsub.f32 %v117, %v1054
    %v1056 = vand.u32 %v1055, 4294901760
    %1057 = vmatpush.msra.mxu0 %v1056
    %v1058 = vand.u32 %v113, 4294901760
    %v1059 = vsub.f32 %v113, %v1058
    %v1060 = vand.u32 %v1059, 4294901760
    %1061 = vmatpush.msra.mxu0 %v1060
    %v1062 = vand.u32 %v109, 4294901760
    %v1063 = vsub.f32 %v109, %v1062
    %v1064 = vand.u32 %v1063, 4294901760
    %1065 = vmatpush.msra.mxu0 %v1064
    %v1066 = vand.u32 %v105, 4294901760
    %v1067 = vsub.f32 %v105, %v1066
    %v1068 = vand.u32 %v1067, 4294901760
    %1069 = vmatpush.msra.mxu0 %v1068
    %v1070 = vand.u32 %v101, 4294901760
    %v1071 = vsub.f32 %v101, %v1070
    %v1072 = vand.u32 %v1071, 4294901760
    %1073 = vmatpush.msra.mxu0 %v1072
    %v1074 = vand.u32 %v97, 4294901760
    %v1075 = vsub.f32 %v97, %v1074
    %v1076 = vand.u32 %v1075, 4294901760
    %1077 = vmatpush.msra.mxu0 %v1076
    %v1078 = vand.u32 %v93, 4294901760
    %v1079 = vsub.f32 %v93, %v1078
    %v1080 = vand.u32 %v1079, 4294901760
    %1081 = vmatpush.msra.mxu0 %v1080
    %v1082 = vand.u32 %v89, 4294901760
    %v1083 = vsub.f32 %v89, %v1082
    %v1084 = vand.u32 %v1083, 4294901760
    %1085 = vmatpush.msra.mxu0 %v1084
    %v1086 = vand.u32 %v85, 4294901760
    %v1087 = vsub.f32 %v85, %v1086
    %v1088 = vand.u32 %v1087, 4294901760
    %1089 = vmatpush.msra.mxu0 %v1088
    %v1090 = vand.u32 %v81, 4294901760
    %v1091 = vsub.f32 %v81, %v1090
    %v1092 = vand.u32 %v1091, 4294901760
    %1093 = vmatpush.msra.mxu0 %v1092
    %v1094 = vand.u32 %v77, 4294901760
    %v1095 = vsub.f32 %v77, %v1094
    %v1096 = vand.u32 %v1095, 4294901760
    %1097 = vmatpush.msra.mxu0 %v1096
    %v1098 = vand.u32 %v73, 4294901760
    %v1099 = vsub.f32 %v73, %v1098
    %v1100 = vand.u32 %v1099, 4294901760
    %1101 = vmatpush.msra.mxu0 %v1100
    %v1102 = vand.u32 %v69, 4294901760
    %v1103 = vsub.f32 %v69, %v1102
    %v1104 = vand.u32 %v1103, 4294901760
    %1105 = vmatpush.msra.mxu0 %v1104
    %v1106 = vand.u32 %v65, 4294901760
    %v1107 = vsub.f32 %v65, %v1106
    %v1108 = vand.u32 %v1107, 4294901760
    %1109 = vmatpush.msra.mxu0 %v1108
    %v1110 = vand.u32 %v61, 4294901760
    %v1111 = vsub.f32 %v61, %v1110
    %v1112 = vand.u32 %v1111, 4294901760
    %1113 = vmatpush.msra.mxu0 %v1112
    %v1114 = vand.u32 %v58, 4294901760
    %1115 = vmatmul.f32.gmra.mxu0 %v1114
    %v1116 = vpop.f32.mrf.mxu0
    %v1117 = vadd.f32 %v1048, %v1116
    %1118 = vdwg.mxu0
    %v1119 = vand.u32 %v121, 4294901760
    %1120 = vmatpush.msra.mxu0 %v1119
    %v1121 = vand.u32 %v117, 4294901760
    %1122 = vmatpush.msra.mxu0 %v1121
    %v1123 = vand.u32 %v113, 4294901760
    %1124 = vmatpush.msra.mxu0 %v1123
    %v1125 = vand.u32 %v109, 4294901760
    %1126 = vmatpush.msra.mxu0 %v1125
    %v1127 = vand.u32 %v105, 4294901760
    %1128 = vmatpush.msra.mxu0 %v1127
    %v1129 = vand.u32 %v101, 4294901760
    %1130 = vmatpush.msra.mxu0 %v1129
    %v1131 = vand.u32 %v97, 4294901760
    %1132 = vmatpush.msra.mxu0 %v1131
    %v1133 = vand.u32 %v93, 4294901760
    %1134 = vmatpush.msra.mxu0 %v1133
    %v1135 = vand.u32 %v89, 4294901760
    %1136 = vmatpush.msra.mxu0 %v1135
    %v1137 = vand.u32 %v85, 4294901760
    %1138 = vmatpush.msra.mxu0 %v1137
    %v1139 = vand.u32 %v81, 4294901760
    %1140 = vmatpush.msra.mxu0 %v1139
    %v1141 = vand.u32 %v77, 4294901760
    %1142 = vmatpush.msra.mxu0 %v1141
    %v1143 = vand.u32 %v73, 4294901760
    %1144 = vmatpush.msra.mxu0 %v1143
    %v1145 = vand.u32 %v69, 4294901760
    %1146 = vmatpush.msra.mxu0 %v1145
    %v1147 = vand.u32 %v65, 4294901760
    %1148 = vmatpush.msra.mxu0 %v1147
    %v1149 = vand.u32 %v61, 4294901760
    %1150 = vmatpush.msra.mxu0 %v1149
    %v1151 = vand.u32 %v58, 4294901760
    %1152 = vmatmul.f32.gmra.mxu0 %v1151
    %v1153 = vpop.f32.mrf.mxu0
    %v1154 = vadd.f32 %v1117, %v1153
    %1155 = vdwg.mxu0
    %v1156 = vand.u32 %v122, 4294901760
    %1157 = vmatpush.msra.mxu0 %v1156
    %v1158 = vand.u32 %v118, 4294901760
    %1159 = vmatpush.msra.mxu0 %v1158
    %v1160 = vand.u32 %v114, 4294901760
    %1161 = vmatpush.msra.mxu0 %v1160
    %v1162 = vand.u32 %v110, 4294901760
    %1163 = vmatpush.msra.mxu0 %v1162
    %v1164 = vand.u32 %v106, 4294901760
    %1165 = vmatpush.msra.mxu0 %v1164
    %v1166 = vand.u32 %v102, 4294901760
    %1167 = vmatpush.msra.mxu0 %v1166
    %v1168 = vand.u32 %v98, 4294901760
    %1169 = vmatpush.msra.mxu0 %v1168
    %v1170 = vand.u32 %v94, 4294901760
    %1171 = vmatpush.msra.mxu0 %v1170
    %v1172 = vand.u32 %v90, 4294901760
    %1173 = vmatpush.msra.mxu0 %v1172
    %v1174 = vand.u32 %v86, 4294901760
    %1175 = vmatpush.msra.mxu0 %v1174
    %v1176 = vand.u32 %v82, 4294901760
    %1177 = vmatpush.msra.mxu0 %v1176
    %v1178 = vand.u32 %v78, 4294901760
    %1179 = vmatpush.msra.mxu0 %v1178
    %v1180 = vand.u32 %v74, 4294901760
    %1181 = vmatpush.msra.mxu0 %v1180
    %v1182 = vand.u32 %v70, 4294901760
    %1183 = vmatpush.msra.mxu0 %v1182
    %v1184 = vand.u32 %v66, 4294901760
    %1185 = vmatpush.msra.mxu0 %v1184
    %v1186 = vand.u32 %v62, 4294901760
    %1187 = vmatpush.msra.mxu0 %v1186
    %v1188 = vand.u32 %v58, 4294901760
    %v1189 = vsub.f32 %v58, %v1188
    %v1190 = vand.u32 %v1189, 4294901760
    %v1191 = vsub.f32 %v1189, %v1190
    %v1192 = vand.u32 %v1191, 4294901760
    %1193 = vmatmul.f32.gmra.mxu0 %v1192
    %v1194 = vpop.f32.mrf.mxu0
    %v1195 = vadd.f32 %v128, %v1194
    %1196 = vdwg.mxu0
    %v1197 = vand.u32 %v122, 4294901760
    %v1198 = vsub.f32 %v122, %v1197
    %v1199 = vand.u32 %v1198, 4294901760
    %v1200 = vsub.f32 %v1198, %v1199
    %v1201 = vand.u32 %v1200, 4294901760
    %1202 = vmatpush.msra.mxu0 %v1201
    %v1203 = vand.u32 %v118, 4294901760
    %v1204 = vsub.f32 %v118, %v1203
    %v1205 = vand.u32 %v1204, 4294901760
    %v1206 = vsub.f32 %v1204, %v1205
    %v1207 = vand.u32 %v1206, 4294901760
    %1208 = vmatpush.msra.mxu0 %v1207
    %v1209 = vand.u32 %v114, 4294901760
    %v1210 = vsub.f32 %v114, %v1209
    %v1211 = vand.u32 %v1210, 4294901760
    %v1212 = vsub.f32 %v1210, %v1211
    %v1213 = vand.u32 %v1212, 4294901760
    %1214 = vmatpush.msra.mxu0 %v1213
    %v1215 = vand.u32 %v110, 4294901760
    %v1216 = vsub.f32 %v110, %v1215
    %v1217 = vand.u32 %v1216, 4294901760
    %v1218 = vsub.f32 %v1216, %v1217
    %v1219 = vand.u32 %v1218, 4294901760
    %1220 = vmatpush.msra.mxu0 %v1219
    %v1221 = vand.u32 %v106, 4294901760
    %v1222 = vsub.f32 %v106, %v1221
    %v1223 = vand.u32 %v1222, 4294901760
    %v1224 = vsub.f32 %v1222, %v1223
    %v1225 = vand.u32 %v1224, 4294901760
    %1226 = vmatpush.msra.mxu0 %v1225
    %v1227 = vand.u32 %v102, 4294901760
    %v1228 = vsub.f32 %v102, %v1227
    %v1229 = vand.u32 %v1228, 4294901760
    %v1230 = vsub.f32 %v1228, %v1229
    %v1231 = vand.u32 %v1230, 4294901760
    %1232 = vmatpush.msra.mxu0 %v1231
    %v1233 = vand.u32 %v98, 4294901760
    %v1234 = vsub.f32 %v98, %v1233
    %v1235 = vand.u32 %v1234, 4294901760
    %v1236 = vsub.f32 %v1234, %v1235
    %v1237 = vand.u32 %v1236, 4294901760
    %1238 = vmatpush.msra.mxu0 %v1237
    %v1239 = vand.u32 %v94, 4294901760
    %v1240 = vsub.f32 %v94, %v1239
    %v1241 = vand.u32 %v1240, 4294901760
    %v1242 = vsub.f32 %v1240, %v1241
    %v1243 = vand.u32 %v1242, 4294901760
    %1244 = vmatpush.msra.mxu0 %v1243
    %v1245 = vand.u32 %v90, 4294901760
    %v1246 = vsub.f32 %v90, %v1245
    %v1247 = vand.u32 %v1246, 4294901760
    %v1248 = vsub.f32 %v1246, %v1247
    %v1249 = vand.u32 %v1248, 4294901760
    %1250 = vmatpush.msra.mxu0 %v1249
    %v1251 = vand.u32 %v86, 4294901760
    %v1252 = vsub.f32 %v86, %v1251
    %v1253 = vand.u32 %v1252, 4294901760
    %v1254 = vsub.f32 %v1252, %v1253
    %v1255 = vand.u32 %v1254, 4294901760
    %1256 = vmatpush.msra.mxu0 %v1255
    %v1257 = vand.u32 %v82, 4294901760
    %v1258 = vsub.f32 %v82, %v1257
    %v1259 = vand.u32 %v1258, 4294901760
    %v1260 = vsub.f32 %v1258, %v1259
    %v1261 = vand.u32 %v1260, 4294901760
    %1262 = vmatpush.msra.mxu0 %v1261
    %v1263 = vand.u32 %v78, 4294901760
    %v1264 = vsub.f32 %v78, %v1263
    %v1265 = vand.u32 %v1264, 4294901760
    %v1266 = vsub.f32 %v1264, %v1265
    %v1267 = vand.u32 %v1266, 4294901760
    %1268 = vmatpush.msra.mxu0 %v1267
    %v1269 = vand.u32 %v74, 4294901760
    %v1270 = vsub.f32 %v74, %v1269
    %v1271 = vand.u32 %v1270, 4294901760
    %v1272 = vsub.f32 %v1270, %v1271
    %v1273 = vand.u32 %v1272, 4294901760
    %1274 = vmatpush.msra.mxu0 %v1273
    %v1275 = vand.u32 %v70, 4294901760
    %v1276 = vsub.f32 %v70, %v1275
    %v1277 = vand.u32 %v1276, 4294901760
    %v1278 = vsub.f32 %v1276, %v1277
    %v1279 = vand.u32 %v1278, 4294901760
    %1280 = vmatpush.msra.mxu0 %v1279
    %v1281 = vand.u32 %v66, 4294901760
    %v1282 = vsub.f32 %v66, %v1281
    %v1283 = vand.u32 %v1282, 4294901760
    %v1284 = vsub.f32 %v1282, %v1283
    %v1285 = vand.u32 %v1284, 4294901760
    %1286 = vmatpush.msra.mxu0 %v1285
    %v1287 = vand.u32 %v62, 4294901760
    %v1288 = vsub.f32 %v62, %v1287
    %v1289 = vand.u32 %v1288, 4294901760
    %v1290 = vsub.f32 %v1288, %v1289
    %v1291 = vand.u32 %v1290, 4294901760
    %1292 = vmatpush.msra.mxu0 %v1291
    %v1293 = vand.u32 %v58, 4294901760
    %1294 = vmatmul.f32.gmra.mxu0 %v1293
    %v1295 = vpop.f32.mrf.mxu0
    %v1296 = vadd.f32 %v1195, %v1295
    %1297 = vdwg.mxu0
    %v1298 = vand.u32 %v122, 4294901760
    %v1299 = vsub.f32 %v122, %v1298
    %1300 = vmatpush.msra.mxu0 %v1299
    %v1301 = vand.u32 %v118, 4294901760
    %v1302 = vsub.f32 %v118, %v1301
    %1303 = vmatpush.msra.mxu0 %v1302
    %v1304 = vand.u32 %v114, 4294901760
    %v1305 = vsub.f32 %v114, %v1304
    %1306 = vmatpush.msra.mxu0 %v1305
    %v1307 = vand.u32 %v110, 4294901760
    %v1308 = vsub.f32 %v110, %v1307
    %1309 = vmatpush.msra.mxu0 %v1308
    %v1310 = vand.u32 %v106, 4294901760
    %v1311 = vsub.f32 %v106, %v1310
    %1312 = vmatpush.msra.mxu0 %v1311
    %v1313 = vand.u32 %v102, 4294901760
    %v1314 = vsub.f32 %v102, %v1313
    %1315 = vmatpush.msra.mxu0 %v1314
    %v1316 = vand.u32 %v98, 4294901760
    %v1317 = vsub.f32 %v98, %v1316
    %1318 = vmatpush.msra.mxu0 %v1317
    %v1319 = vand.u32 %v94, 4294901760
    %v1320 = vsub.f32 %v94, %v1319
    %1321 = vmatpush.msra.mxu0 %v1320
    %v1322 = vand.u32 %v90, 4294901760
    %v1323 = vsub.f32 %v90, %v1322
    %1324 = vmatpush.msra.mxu0 %v1323
    %v1325 = vand.u32 %v86, 4294901760
    %v1326 = vsub.f32 %v86, %v1325
    %1327 = vmatpush.msra.mxu0 %v1326
    %v1328 = vand.u32 %v82, 4294901760
    %v1329 = vsub.f32 %v82, %v1328
    %1330 = vmatpush.msra.mxu0 %v1329
    %v1331 = vand.u32 %v78, 4294901760
    %v1332 = vsub.f32 %v78, %v1331
    %1333 = vmatpush.msra.mxu0 %v1332
    %v1334 = vand.u32 %v74, 4294901760
    %v1335 = vsub.f32 %v74, %v1334
    %1336 = vmatpush.msra.mxu0 %v1335
    %v1337 = vand.u32 %v70, 4294901760
    %v1338 = vsub.f32 %v70, %v1337
    %1339 = vmatpush.msra.mxu0 %v1338
    %v1340 = vand.u32 %v66, 4294901760
    %v1341 = vsub.f32 %v66, %v1340
    %1342 = vmatpush.msra.mxu0 %v1341
    %v1343 = vand.u32 %v62, 4294901760
    %v1344 = vsub.f32 %v62, %v1343
    %1345 = vmatpush.msra.mxu0 %v1344
    %v1346 = vand.u32 %v58, 4294901760
    %v1347 = vsub.f32 %v58, %v1346
    %1348 = vmatmul.f32.gmra.mxu0 %v1347
    %v1349 = vpop.f32.mrf.mxu0
    %v1350 = vadd.f32 %v1296, %v1349
    %1351 = vdwg.mxu0
    %v1352 = vand.u32 %v122, 4294901760
    %1353 = vmatpush.msra.mxu0 %v1352
    %v1354 = vand.u32 %v118, 4294901760
    %1355 = vmatpush.msra.mxu0 %v1354
    %v1356 = vand.u32 %v114, 4294901760
    %1357 = vmatpush.msra.mxu0 %v1356
    %v1358 = vand.u32 %v110, 4294901760
    %1359 = vmatpush.msra.mxu0 %v1358
    %v1360 = vand.u32 %v106, 4294901760
    %1361 = vmatpush.msra.mxu0 %v1360
    %v1362 = vand.u32 %v102, 4294901760
    %1363 = vmatpush.msra.mxu0 %v1362
    %v1364 = vand.u32 %v98, 4294901760
    %1365 = vmatpush.msra.mxu0 %v1364
    %v1366 = vand.u32 %v94, 4294901760
    %1367 = vmatpush.msra.mxu0 %v1366
    %v1368 = vand.u32 %v90, 4294901760
    %1369 = vmatpush.msra.mxu0 %v1368
    %v1370 = vand.u32 %v86, 4294901760
    %1371 = vmatpush.msra.mxu0 %v1370
    %v1372 = vand.u32 %v82, 4294901760
    %1373 = vmatpush.msra.mxu0 %v1372
    %v1374 = vand.u32 %v78, 4294901760
    %1375 = vmatpush.msra.mxu0 %v1374
    %v1376 = vand.u32 %v74, 4294901760
    %1377 = vmatpush.msra.mxu0 %v1376
    %v1378 = vand.u32 %v70, 4294901760
    %1379 = vmatpush.msra.mxu0 %v1378
    %v1380 = vand.u32 %v66, 4294901760
    %1381 = vmatpush.msra.mxu0 %v1380
    %v1382 = vand.u32 %v62, 4294901760
    %1383 = vmatpush.msra.mxu0 %v1382
    %v1384 = vand.u32 %v58, 4294901760
    %v1385 = vsub.f32 %v58, %v1384
    %v1386 = vand.u32 %v1385, 4294901760
    %1387 = vmatmul.f32.gmra.mxu0 %v1386
    %v1388 = vpop.f32.mrf.mxu0
    %v1389 = vadd.f32 %v1350, %v1388
    %1390 = vdwg.mxu0
    %v1391 = vand.u32 %v122, 4294901760
    %v1392 = vsub.f32 %v122, %v1391
    %v1393 = vand.u32 %v1392, 4294901760
    %1394 = vmatpush.msra.mxu0 %v1393
    %v1395 = vand.u32 %v118, 4294901760
    %v1396 = vsub.f32 %v118, %v1395
    %v1397 = vand.u32 %v1396, 4294901760
    %1398 = vmatpush.msra.mxu0 %v1397
    %v1399 = vand.u32 %v114, 4294901760
    %v1400 = vsub.f32 %v114, %v1399
    %v1401 = vand.u32 %v1400, 4294901760
    %1402 = vmatpush.msra.mxu0 %v1401
    %v1403 = vand.u32 %v110, 4294901760
    %v1404 = vsub.f32 %v110, %v1403
    %v1405 = vand.u32 %v1404, 4294901760
    %1406 = vmatpush.msra.mxu0 %v1405
    %v1407 = vand.u32 %v106, 4294901760
    %v1408 = vsub.f32 %v106, %v1407
    %v1409 = vand.u32 %v1408, 4294901760
    %1410 = vmatpush.msra.mxu0 %v1409
    %v1411 = vand.u32 %v102, 4294901760
    %v1412 = vsub.f32 %v102, %v1411
    %v1413 = vand.u32 %v1412, 4294901760
    %1414 = vmatpush.msra.mxu0 %v1413
    %v1415 = vand.u32 %v98, 4294901760
    %v1416 = vsub.f32 %v98, %v1415
    %v1417 = vand.u32 %v1416, 4294901760
    %1418 = vmatpush.msra.mxu0 %v1417
    %v1419 = vand.u32 %v94, 4294901760
    %v1420 = vsub.f32 %v94, %v1419
    %v1421 = vand.u32 %v1420, 4294901760
    %1422 = vmatpush.msra.mxu0 %v1421
    %v1423 = vand.u32 %v90, 4294901760
    %v1424 = vsub.f32 %v90, %v1423
    %v1425 = vand.u32 %v1424, 4294901760
    %1426 = vmatpush.msra.mxu0 %v1425
    %v1427 = vand.u32 %v86, 4294901760
    %v1428 = vsub.f32 %v86, %v1427
    %v1429 = vand.u32 %v1428, 4294901760
    %1430 = vmatpush.msra.mxu0 %v1429
    %v1431 = vand.u32 %v82, 4294901760
    %v1432 = vsub.f32 %v82, %v1431
    %v1433 = vand.u32 %v1432, 4294901760
    %1434 = vmatpush.msra.mxu0 %v1433
    %v1435 = vand.u32 %v78, 4294901760
    %v1436 = vsub.f32 %v78, %v1435
    %v1437 = vand.u32 %v1436, 4294901760
    %1438 = vmatpush.msra.mxu0 %v1437
    %v1439 = vand.u32 %v74, 4294901760
    %v1440 = vsub.f32 %v74, %v1439
    %v1441 = vand.u32 %v1440, 4294901760
    %1442 = vmatpush.msra.mxu0 %v1441
    %v1443 = vand.u32 %v70, 4294901760
    %v1444 = vsub.f32 %v70, %v1443
    %v1445 = vand.u32 %v1444, 4294901760
    %1446 = vmatpush.msra.mxu0 %v1445
    %v1447 = vand.u32 %v66, 4294901760
    %v1448 = vsub.f32 %v66, %v1447
    %v1449 = vand.u32 %v1448, 4294901760
    %1450 = vmatpush.msra.mxu0 %v1449
    %v1451 = vand.u32 %v62, 4294901760
    %v1452 = vsub.f32 %v62, %v1451
    %v1453 = vand.u32 %v1452, 4294901760
    %1454 = vmatpush.msra.mxu0 %v1453
    %v1455 = vand.u32 %v58, 4294901760
    %1456 = vmatmul.f32.gmra.mxu0 %v1455
    %v1457 = vpop.f32.mrf.mxu0
    %v1458 = vadd.f32 %v1389, %v1457
    %1459 = vdwg.mxu0
    %v1460 = vand.u32 %v122, 4294901760
    %1461 = vmatpush.msra.mxu0 %v1460
    %v1462 = vand.u32 %v118, 4294901760
    %1463 = vmatpush.msra.mxu0 %v1462
    %v1464 = vand.u32 %v114, 4294901760
    %1465 = vmatpush.msra.mxu0 %v1464
    %v1466 = vand.u32 %v110, 4294901760
    %1467 = vmatpush.msra.mxu0 %v1466
    %v1468 = vand.u32 %v106, 4294901760
    %1469 = vmatpush.msra.mxu0 %v1468
    %v1470 = vand.u32 %v102, 4294901760
    %1471 = vmatpush.msra.mxu0 %v1470
    %v1472 = vand.u32 %v98, 4294901760
    %1473 = vmatpush.msra.mxu0 %v1472
    %v1474 = vand.u32 %v94, 4294901760
    %1475 = vmatpush.msra.mxu0 %v1474
    %v1476 = vand.u32 %v90, 4294901760
    %1477 = vmatpush.msra.mxu0 %v1476
    %v1478 = vand.u32 %v86, 4294901760
    %1479 = vmatpush.msra.mxu0 %v1478
    %v1480 = vand.u32 %v82, 4294901760
    %1481 = vmatpush.msra.mxu0 %v1480
    %v1482 = vand.u32 %v78, 4294901760
    %1483 = vmatpush.msra.mxu0 %v1482
    %v1484 = vand.u32 %v74, 4294901760
    %1485 = vmatpush.msra.mxu0 %v1484
    %v1486 = vand.u32 %v70, 4294901760
    %1487 = vmatpush.msra.mxu0 %v1486
    %v1488 = vand.u32 %v66, 4294901760
    %1489 = vmatpush.msra.mxu0 %v1488
    %v1490 = vand.u32 %v62, 4294901760
    %1491 = vmatpush.msra.mxu0 %v1490
    %v1492 = vand.u32 %v58, 4294901760
    %1493 = vmatmul.f32.gmra.mxu0 %v1492
    %v1494 = vpop.f32.mrf.mxu0
    %v1495 = vadd.f32 %v1458, %v1494
    %1496 = vdwg.mxu0
    %v1501 = vrot.slane %v813, 7
    %v1502 = vrot.slane %v1154, 6
    %v1503 = vrot.slane %v1495, 5
    %vm1504 = vcmask 1040384
    %v1505 = vsel %vm1504, %v472, %v1501
    %vm1506 = vcmask 1042434
    %v1507 = vsel %vm1506, %v1502, %v1503
    %vm1508 = vcmask 1041408
    %v1509 = vsel %vm1508, %v1505, %v1507
    %v1511 = vlaneseq
    %vm1512 = vcmp.ge.s32.totalorder %v1511, 0
    %vm1513 = vcmp.lt.s32.totalorder %v1511, 512
    %vm1514 = vmand %vm1512, %vm1513
    %1515 = vst.msk [vmem:[#allocation8] sm:$0xf] %vm1514, %v1509
    // Predicated region
    $region26: #{tpu_custom_call.1} parent=1 // pred_check
      _
    $region27: #{tpu_custom_call.1} parent=1 // pred_check_branch
      %1517 = sbr.rel (0) target = $region29
    $region28: #{tpu_custom_call.1} parent=1 // pred_region
      %1519 = vsyncadd [#allocation4], 0
      %s1521 = sshll.u32 [#allocation8], 4
      %s1522 = int_to_ptr.vmem [resolvable:$true] %s1521
      %s1523 = sshll.u32 %s3, 4
      %s1524 = int_to_ptr.hbm [resolvable:$true] %s1523
      %1526 = dma.vmem_to_hbm [thread:$0]  %s1522, 64, %s1524, [#allocation4]
    $region29: #{tpu_custom_call.1} parent=1 // pred_fallthru
      _
    // Predicated region
    $region30: #{tpu_custom_call.1} parent=1 // pred_check
      _
    $region31: #{tpu_custom_call.1} parent=1 // pred_check_branch
      %1528 = sbr.rel (0) target = $region33
    $region32: #{tpu_custom_call.1} parent=1 // pred_region
      %1530 = dma.done [#allocation4], 64
    $region33: #{tpu_custom_call.1} parent=1 // pred_fallthru
      _
    %1531 = vsyncpa [#allocation3], 1
    %1532 = vsyncpa [#allocation6], 1
    %1533 = vsyncpa [#allocation4], 1

</llo_original>
